<compile_context>
chip_gen: v6e
topology: v6e:2x2x1
jax: 0.10.0
libtpu: 0.0.40
codegen_flags: <defaults>
</compile_context>

<pallas_src>
import functools

import jax
import jax.numpy as jnp
from jax.experimental import pallas as pl
from jax.experimental.pallas import tpu as pltpu

_LANE = 128      # lane width
_SUBLANE = 8     # f32 sublane granularity (scaled up for narrower dtypes)


def _round_up(x, m):
    return (x + m - 1) // m * m


def _mlp_kernel(h_ref, w1_ref, b1_ref, w2_ref, b2_ref, o_ref):
    # Two MXU matmuls with f32 accumulation; bias-add / ReLU stay f32 on the VPU.
    h = h_ref[...].astype(jnp.float32)                                  # (TB, rnn)
    z1 = jnp.dot(h, w1_ref[...], preferred_element_type=jnp.float32) + b1_ref[...]
    a1 = jnp.maximum(z1, 0.0)                                           # (TB, Hpad), lane-dense
    z2 = jnp.dot(a1, w2_ref[...], preferred_element_type=jnp.float32) + b2_ref[...]
    # Store only the true class columns: the HBM output array is narrow, so the
    # writeback DMA moves class_num-wide rows; the masked vst is compute-side
    # and fully hidden under DMA.
    o_ref[...] = z2[:, : o_ref.shape[1]].astype(o_ref.dtype)


def _batch_dim_semantics(num_steps):
    # Engage both TensorCores on v7x; plain "parallel" elsewhere (measured to be
    # equivalent to "arbitrary" on single-TC chips).
    try:
        kind = jax.devices()[0].device_kind.lower()
    except Exception:
        kind = ""
    if "v7" in kind and num_steps >= 2 and num_steps % 2 == 0:
        return (pltpu.CORE_PARALLEL,)
    return ("parallel",)


@functools.partial(jax.jit, static_argnames=("block_b",))
def prediction_network_forward(h, w1, b1, w2, b2, *, block_b=4096):
    """h: (B, rnn_size); w1: (rnn_size, hidden); b1: (1, hidden);
       w2: (hidden, class_num); b2: (1, class_num)  ->  (B, class_num).

    Output dtype follows h.dtype: supply bf16 activations from upstream to halve
    both the input stream and the writeback (no wrapper-side cast is performed)."""
    B, rnn_size = h.shape
    hidden = w1.shape[1]
    class_num = w2.shape[1]
    out_dtype = h.dtype
    h_item = jnp.dtype(h.dtype).itemsize
    out_item = jnp.dtype(out_dtype).itemsize

    # Weights/biases are tiny and VMEM-resident (constant index_map => fetched
    # once): keep them f32 for accuracy regardless of the activation dtype.
    w1 = w1.astype(jnp.float32)
    b1 = b1.reshape(1, hidden).astype(jnp.float32)
    w2 = w2.astype(jnp.float32)
    b2 = b2.reshape(1, class_num).astype(jnp.float32)

    # Lane-dense hidden: zero-padded hidden columns give ReLU(0)=0 and w2's zero
    # rows contribute nothing, so the math is unchanged.
    hid_pad = _round_up(hidden, _LANE)
    if hid_pad != hidden:
        w1 = jnp.pad(w1, ((0, 0), (0, hid_pad - hidden)))
        b1 = jnp.pad(b1, ((0, 0), (0, hid_pad - hidden)))
        w2 = jnp.pad(w2, ((0, hid_pad - hidden), (0, 0)))

    # Lane-dense class width *in VMEM only* (weights/biases); the HBM output
    # array keeps the true class_num width.
    c_pad = _round_up(class_num, _LANE)
    if c_pad != class_num:
        w2 = jnp.pad(w2, ((0, 0), (0, c_pad - class_num)))
        b2 = jnp.pad(b2, ((0, 0), (0, c_pad - class_num)))

    # Batch tiling: large tiles amortize the ~0.35 us per-grid-step overhead.
    sub = _SUBLANE * max(1, 4 // h_item)          # 8 for f32, 16 for bf16
    tb = min(_round_up(block_b, sub), _round_up(B, sub))
    b_pad = _round_up(B, tb)
    if b_pad != B:
        h = jnp.pad(h, ((0, b_pad - B), (0, 0)))
    num_steps = b_pad // tb

    cost = pl.CostEstimate(
        flops=2 * b_pad * (rnn_size * hid_pad + hid_pad * c_pad),
        transcendentals=0,
        bytes_accessed=(b_pad * rnn_size * h_item
                        + (rnn_size * hid_pad + hid_pad * c_pad
                           + hid_pad + c_pad) * 4
                        + b_pad * class_num * out_item),
    )

    # Explicit VMEM budget (v5e's default scoped limit is only 16 MiB).
    # VMEM footprints are lane-padded to 128 even for narrow arrays.
    rnn_vmem = _round_up(rnn_size, _LANE)
    vmem_est = (2 * tb * rnn_vmem * h_item                       # double-buffered input
                + 2 * tb * c_pad * out_item                      # double-buffered output
                + 2 * (rnn_vmem * hid_pad + hid_pad * c_pad
                       + hid_pad + c_pad) * 4                    # resident weights/biases
                + 4 * tb * max(hid_pad, c_pad) * 4)              # z1/a1/z2 intermediates
    vmem_limit = int(min(max(vmem_est * 3 // 2 + (4 << 20), 32 << 20), 64 << 20))

    out = pl.pallas_call(
        _mlp_kernel,
        out_shape=jax.ShapeDtypeStruct((b_pad, class_num), out_dtype),
        grid_spec=pltpu.PrefetchScalarGridSpec(
            num_scalar_prefetch=0,
            grid=(num_steps,),
            in_specs=[
                pl.BlockSpec((tb, rnn_size), lambda i: (i, 0)),       # streamed per tile
                pl.BlockSpec((rnn_size, hid_pad), lambda i: (0, 0)),  # VMEM-resident
                pl.BlockSpec((1, hid_pad), lambda i: (0, 0)),
                pl.BlockSpec((hid_pad, c_pad), lambda i: (0, 0)),
                pl.BlockSpec((1, c_pad), lambda i: (0, 0)),
            ],
            # Narrow output: block last dim equals the full array dim (legal),
            # so writeback traffic is class_num wide, not padded-to-128 wide.
            out_specs=pl.BlockSpec((tb, class_num), lambda i: (i, 0)),
        ),
        compiler_params=pltpu.CompilerParams(
            dimension_semantics=_batch_dim_semantics(num_steps),
            vmem_limit_bytes=vmem_limit,
        ),
        cost_estimate=cost,
    )(h, w1, b1, w2, b2)

    return out[:B]


def init_params(key, rnn_size, hidden_size=64, class_num=5, dtype=jnp.float32):
    """Deterministic init matching nn.Linear's default U(-1/sqrt(fan_in), +1/sqrt(fan_in)).
       Weights are stored pre-transposed as (in_features, out_features)."""
    k1, k2, k3, k4 = jax.random.split(key, 4)
    bound1 = 1.0 / jnp.sqrt(rnn_size)
    bound2 = 1.0 / jnp.sqrt(hidden_size)
    w1 = jax.random.uniform(k1, (rnn_size, hidden_size), dtype, -bound1, bound1)
    b1 = jax.random.uniform(k2, (1, hidden_size), dtype, -bound1, bound1)
    w2 = jax.random.uniform(k3, (hidden_size, class_num), dtype, -bound2, bound2)
    b2 = jax.random.uniform(k4, (1, class_num), dtype, -bound2, bound2)
    return w1, b1, w2, b2


if __name__ == "__main__":
    rnn_size, hidden_size, class_num = 32, 64, 5
    batch = 2

    key = jax.random.PRNGKey(0)
    kx, kp = jax.random.split(key)
    h = jax.random.normal(kx, (batch, rnn_size), jnp.float32)
    w1, b1, w2, b2 = init_params(kp, rnn_size, hidden_size, class_num)

    # Pure-JAX reference for the same forward pass.
    ref = jnp.maximum(h @ w1 + b1, 0.0) @ w2 + b2

    # f32 path: tight tolerance.
    out = jax.block_until_ready(prediction_network_forward(h, w1, b1, w2, b2))
    assert out.shape == (batch, class_num)
    assert out.dtype == jnp.float32
    assert jnp.allclose(out, ref, atol=1e-5, rtol=1e-5)

    # bf16 activations supplied by the caller (simulates an upstream bf16
    # producer): streamed as-is, f32 accumulation, bf16 output. Loose tolerance.
    h_bf16 = h.astype(jnp.bfloat16)
    out_bf16 = jax.block_until_ready(
        prediction_network_forward(h_bf16, w1, b1, w2, b2))
    assert out_bf16.shape == (batch, class_num)
    assert out_bf16.dtype == jnp.bfloat16
    assert bool(jnp.all(jnp.isfinite(out_bf16.astype(jnp.float32))))
    assert jnp.allclose(out_bf16.astype(jnp.float32), ref, atol=1e-1, rtol=1e-1)

    # Multi-tile pipelined path: batch not a multiple of the tile size.
    big_b = 10000
    h_big = jax.random.normal(jax.random.PRNGKey(1), (big_b, rnn_size), jnp.float32)
    out_big = jax.block_until_ready(
        prediction_network_forward(h_big, w1, b1, w2, b2, block_b=4096))
    ref_big = jnp.maximum(h_big @ w1 + b1, 0.0) @ w2 + b2
    assert out_big.shape == (big_b, class_num)
    assert jnp.allclose(out_big, ref_big, atol=1e-4, rtol=1e-4)

    print("KERNEL_OK")
</pallas_src>

<mosaic_0001>
module attributes {stable_mosaic.version = 11 : i64} {
  func.func @_mlp_kernel(%arg0: i32, %arg1: memref<8x32xf32, #tpu.memory_space<vmem>>, %arg2: memref<32x128xf32, #tpu.memory_space<vmem>>, %arg3: memref<1x128xf32, #tpu.memory_space<vmem>>, %arg4: memref<128x128xf32, #tpu.memory_space<vmem>>, %arg5: memref<1x128xf32, #tpu.memory_space<vmem>>, %arg6: memref<8x5xf32, #tpu.memory_space<vmem>>) attributes {dimension_semantics = [#tpu.dimension_semantics<parallel>], iteration_bounds = array<i64: 1>, scalar_prefetch = 0 : i64, scratch_operands = 0 : i64, tpu.core_type = #tpu.core_type<tc>, window_params = [{transform_indices = @transform_0, window_bounds = array<i64: 8, 32>}, {pipeline_mode = #tpu.pipeline_mode<synchronous>, transform_indices = @transform_1, window_bounds = array<i64: 32, 128>}, {pipeline_mode = #tpu.pipeline_mode<synchronous>, transform_indices = @transform_2, window_bounds = array<i64: 1, 128>}, {pipeline_mode = #tpu.pipeline_mode<synchronous>, transform_indices = @transform_3, window_bounds = array<i64: 128, 128>}, {pipeline_mode = #tpu.pipeline_mode<synchronous>, transform_indices = @transform_4, window_bounds = array<i64: 1, 128>}, {transform_indices = @transform_5, window_bounds = array<i64: 8, 5>}]} {
    %c0 = arith.constant 0 : index
    %c0_0 = arith.constant 0 : index
    %0 = vector.load %arg1[%c0, %c0_0] : memref<8x32xf32, #tpu.memory_space<vmem>>, vector<8x32xf32>
    %c0_1 = arith.constant 0 : index
    %c0_2 = arith.constant 0 : index
    %1 = vector.load %arg2[%c0_1, %c0_2] : memref<32x128xf32, #tpu.memory_space<vmem>>, vector<32x128xf32>
    %cst = arith.constant dense<0.000000e+00> : vector<8x128xf32>
    %2 = tpu.matmul %0, %1, %cst {dimension_numbers = #tpu.dot_dimension_numbers<[1], [0], [0], [1], [0, 0, 1, 1], [], []>} : vector<8x32xf32>, vector<32x128xf32>, vector<8x128xf32> -> vector<8x128xf32>
    %c0_3 = arith.constant 0 : index
    %c0_4 = arith.constant 0 : index
    %3 = vector.load %arg3[%c0_3, %c0_4] : memref<1x128xf32, #tpu.memory_space<vmem>>, vector<1x128xf32>
    %4 = vector.broadcast %3 : vector<1x128xf32> to vector<8x128xf32>
    %5 = arith.addf %2, %4 : vector<8x128xf32>
    %cst_5 = arith.constant 0.000000e+00 : f32
    %6 = vector.broadcast %cst_5 : f32 to vector<8x128xf32>
    %7 = arith.maximumf %5, %6 : vector<8x128xf32>
    %c0_6 = arith.constant 0 : index
    %c0_7 = arith.constant 0 : index
    %8 = vector.load %arg4[%c0_6, %c0_7] : memref<128x128xf32, #tpu.memory_space<vmem>>, vector<128x128xf32>
    %cst_8 = arith.constant dense<0.000000e+00> : vector<8x128xf32>
    %9 = tpu.matmul %7, %8, %cst_8 {dimension_numbers = #tpu.dot_dimension_numbers<[1], [0], [0], [1], [0, 0, 1, 1], [], []>} : vector<8x128xf32>, vector<128x128xf32>, vector<8x128xf32> -> vector<8x128xf32>
    %c0_9 = arith.constant 0 : index
    %c0_10 = arith.constant 0 : index
    %10 = vector.load %arg5[%c0_9, %c0_10] : memref<1x128xf32, #tpu.memory_space<vmem>>, vector<1x128xf32>
    %11 = vector.broadcast %10 : vector<1x128xf32> to vector<8x128xf32>
    %12 = arith.addf %9, %11 : vector<8x128xf32>
    %13 = vector.extract_strided_slice %12 {offsets = [0, 0], sizes = [8, 5], strides = [1, 1]} : vector<8x128xf32> to vector<8x5xf32>
    %c0_11 = arith.constant 0 : index
    %c0_12 = arith.constant 0 : index
    %14 = vector.load %arg6[%c0_11, %c0_12] : memref<8x5xf32, #tpu.memory_space<vmem>>, vector<8x5xf32>
    tpu.vector_store %arg6[%c0_11, %c0_12], %13 {strides = array<i32>} : memref<8x5xf32, #tpu.memory_space<vmem>>, vector<8x5xf32>,
    return
  }
  func.func @transform_0(%arg0: i32) -> (i32, i32) {
    %c0_i32 = arith.constant 0 : i32
    %c0_i32_0 = arith.constant 0 : i32
    return %arg0, %c0_i32 : i32, i32
  }
  func.func @transform_1(%arg0: i32) -> (i32, i32) {
    %c0_i32 = arith.constant 0 : i32
    %c0_i32_0 = arith.constant 0 : i32
    %c0_i32_1 = arith.constant 0 : i32
    return %c0_i32, %c0_i32_0 : i32, i32
  }
  func.func @transform_2(%arg0: i32) -> (i32, i32) {
    %c0_i32 = arith.constant 0 : i32
    %c0_i32_0 = arith.constant 0 : i32
    %c0_i32_1 = arith.constant 0 : i32
    return %c0_i32, %c0_i32_0 : i32, i32
  }
  func.func @transform_3(%arg0: i32) -> (i32, i32) {
    %c0_i32 = arith.constant 0 : i32
    %c0_i32_0 = arith.constant 0 : i32
    %c0_i32_1 = arith.constant 0 : i32
    return %c0_i32, %c0_i32_0 : i32, i32
  }
  func.func @transform_4(%arg0: i32) -> (i32, i32) {
    %c0_i32 = arith.constant 0 : i32
    %c0_i32_0 = arith.constant 0 : i32
    %c0_i32_1 = arith.constant 0 : i32
    return %c0_i32, %c0_i32_0 : i32, i32
  }
  func.func @transform_5(%arg0: i32) -> (i32, i32) {
    %c0_i32 = arith.constant 0 : i32
    %c0_i32_0 = arith.constant 0 : i32
    return %arg0, %c0_i32 : i32, i32
  }
}

</mosaic_0001>

<llo_original>
// kernel: prediction_network_forward.1
$region0: #{prediction_network_forward.1}
  #allocation0 [shape = 'u32[]', space=smem, size = 0x4, offset = 0x4, fixed_abs, tag = 'smem constant byte address 0x4 - core index']
  #allocation1 [shape = 'u32[144,128]{1,0:T(1,128)}', space=vmem, size = 0x12000, scoped, tag = 'internal scratch']
  %s0 = inlined_call_operand.vmem [shape: f32[8,32], index: 0, kind: input, shape index: {}]
  %s1 = inlined_call_operand.vmem [shape: f32[32,128], index: 1, kind: input, shape index: {}]
  %s2 = inlined_call_operand.vmem [shape: f32[1,128], index: 2, kind: input, shape index: {}]
  %s3 = inlined_call_operand.vmem [shape: f32[128,128], index: 3, kind: input, shape index: {}]
  %s4 = inlined_call_operand.vmem [shape: f32[1,128], index: 4, kind: input, shape index: {}]
  %s5 = inlined_call_operand.vmem [shape: f32[8,5], index: 5, kind: output, shape index: {}]
  %s6 = sld [smem:[#allocation0]]
  $region30: #{prediction_network_forward.1} parent=0
    _
  %s8 = ssub.s32 1, %s6
  %s9 = scalar_select 0, %s8, %s6
  // Predicated region
  $region2: #{prediction_network_forward.1} parent=0 // pred_check
    _
  $region3: #{prediction_network_forward.1} parent=0 // pred_check_branch
    %11 = sbr.rel (0) target = $region5
  $region4: #{prediction_network_forward.1} parent=0 // pred_region
    _
  $region5: #{prediction_network_forward.1} parent=0 // pred_fallthru
    _
  // Predicated region
  $region6: #{prediction_network_forward.1} parent=0 // pred_check
    _
  $region7: #{prediction_network_forward.1} parent=0 // pred_check_branch
    %13 = sbr.rel (0) target = $region9
  $region8: #{prediction_network_forward.1} parent=0 // pred_region
    _
  $region9: #{prediction_network_forward.1} parent=0 // pred_fallthru
    _
  // Predicated region
  $region10: #{prediction_network_forward.1} parent=0 // pred_check
    _
  $region11: #{prediction_network_forward.1} parent=0 // pred_check_branch
    %15 = sbr.rel (0) target = $region13
  $region12: #{prediction_network_forward.1} parent=0 // pred_region
    _
  $region13: #{prediction_network_forward.1} parent=0 // pred_fallthru
    _
  // Predicated region
  $region14: #{prediction_network_forward.1} parent=0 // pred_check
    _
  $region15: #{prediction_network_forward.1} parent=0 // pred_check_branch
    %17 = sbr.rel (0) target = $region17
  $region16: #{prediction_network_forward.1} parent=0 // pred_region
    _
  $region17: #{prediction_network_forward.1} parent=0 // pred_fallthru
    _
  // Predicated region
  $region18: #{prediction_network_forward.1} parent=0 // pred_check
    _
  $region19: #{prediction_network_forward.1} parent=0 // pred_check_branch
    %19 = sbr.rel (0) target = $region21
  $region20: #{prediction_network_forward.1} parent=0 // pred_region
    _
  $region21: #{prediction_network_forward.1} parent=0 // pred_fallthru
    _
  %v20 = vld [vmem:[%s0] sm:$0xff]
  %v21 = vld [vmem:[%s1] sm:$0xff]
  %v22 = vld [vmem:[%s1 + $0x8] sm:$0xff]
  %v23 = vld [vmem:[%s1 + $0x10] sm:$0xff]
  %v24 = vld [vmem:[%s1 + $0x18] sm:$0xff]
  %v25 = vld [vmem:[%s2] sm:$0x1]
  %v27 = vlaneseq
  %v28 = vshrl.u32 %v27, 7
  %v29 = vsub.s32 0, %v28
  %v30 = vrot.slane %v25, %v29
  %vm32 = vcmask 261120
  %v34 = vsel %vm32, %v20, 0
  %36 = vmatprep.subr.mxu0 0.0
  %37 = vmatpush1.msra.mxu0 0.0
  %38 = vmatprep.subr.mxu0 0.0
  %39 = vmatpush1.msra.mxu0 0.0
  %40 = vmatprep.subr.mxu0 0.0
  %41 = vmatpush1.msra.mxu0 0.0
  %42 = vmatprep.subr.mxu0 0.0
  %43 = vmatpush1.msra.mxu0 0.0
  %44 = vmatprep.subr.mxu0 0.0
  %45 = vmatpush1.msra.mxu0 0.0
  %46 = vmatprep.subr.mxu0 0.0
  %47 = vmatpush1.msra.mxu0 0.0
  %48 = vmatprep.subr.mxu0 0.0
  %49 = vmatpush1.msra.mxu0 0.0
  %50 = vmatprep.subr.mxu0 0.0
  %51 = vmatpush1.msra.mxu0 0.0
  %52 = vmatprep.subr.mxu0 0.0
  %53 = vmatpush1.msra.mxu0 0.0
  %54 = vmatprep.subr.mxu0 0.0
  %55 = vmatpush1.msra.mxu0 0.0
  %56 = vmatprep.subr.mxu0 0.0
  %57 = vmatpush1.msra.mxu0 0.0
  %58 = vmatprep.subr.mxu0 0.0
  %59 = vmatpush1.msra.mxu0 0.0
  %60 = vmatprep.subr.mxu0 0.0
  %61 = vmatpush1.msra.mxu0 %v24
  %62 = vmatprep.subr.mxu0 0.0
  %63 = vmatpush1.msra.mxu0 %v23
  %64 = vmatprep.subr.mxu0 0.0
  %65 = vmatpush1.msra.mxu0 %v22
  %66 = vmatprep.subr.mxu0 0.0
  %67 = vmatpush1.msra.mxu0 %v21
  %68 = vmatprep.subr.mxu0 0.0
  %69 = vmatpush2.msra.mxu0 0.0
  %70 = vmatprep.subr.mxu0 0.0
  %71 = vmatpush2.msra.mxu0 0.0
  %72 = vmatprep.subr.mxu0 0.0
  %73 = vmatpush2.msra.mxu0 0.0
  %74 = vmatprep.subr.mxu0 0.0
  %75 = vmatpush2.msra.mxu0 0.0
  %76 = vmatprep.subr.mxu0 0.0
  %77 = vmatpush2.msra.mxu0 0.0
  %78 = vmatprep.subr.mxu0 0.0
  %79 = vmatpush2.msra.mxu0 0.0
  %80 = vmatprep.subr.mxu0 0.0
  %81 = vmatpush2.msra.mxu0 0.0
  %82 = vmatprep.subr.mxu0 0.0
  %83 = vmatpush2.msra.mxu0 0.0
  %84 = vmatprep.subr.mxu0 0.0
  %85 = vmatpush2.msra.mxu0 0.0
  %86 = vmatprep.subr.mxu0 0.0
  %87 = vmatpush2.msra.mxu0 0.0
  %88 = vmatprep.subr.mxu0 0.0
  %89 = vmatpush2.msra.mxu0 0.0
  %90 = vmatprep.subr.mxu0 0.0
  %91 = vmatpush2.msra.mxu0 0.0
  %92 = vmatprep.subr.mxu0 0.0
  %93 = vmatpush2.msra.mxu0 0.0
  %94 = vmatprep.subr.mxu0 0.0
  %95 = vmatpush2.msra.mxu0 0.0
  %96 = vmatprep.subr.mxu0 0.0
  %97 = vmatpush2.msra.mxu0 0.0
  %98 = vmatprep.subr.mxu0 0.0
  %99 = vmatpush2.msra.mxu0 0.0
  %100 = vmatprep.mubr.f32.mxu0 0.0
  %101 = vmatmul.mubr.f32.gmra.mxu0 %v34
  %v102 = vpop.f32.mrf.mxu0
  %v103 = vadd.f32 %v30, %v102
  %v104 = vpop.f32.mrf.mxu0
  %105 = vdwg.mxu0
  %v106 = vmax.f32 %v103, 0.0
  %v107 = vld [vmem:[%s3] sm:$0xff]
  %v108 = vld [vmem:[%s3 + $0x8] sm:$0xff]
  %v109 = vld [vmem:[%s3 + $0x10] sm:$0xff]
  %v110 = vld [vmem:[%s3 + $0x18] sm:$0xff]
  %v111 = vld [vmem:[%s3 + $0x20] sm:$0xff]
  %v112 = vld [vmem:[%s3 + $0x28] sm:$0xff]
  %v113 = vld [vmem:[%s3 + $0x30] sm:$0xff]
  %v114 = vld [vmem:[%s3 + $0x38] sm:$0xff]
  %v115 = vld [vmem:[%s3 + $0x40] sm:$0xff]
  %v116 = vld [vmem:[%s3 + $0x48] sm:$0xff]
  %v117 = vld [vmem:[%s3 + $0x50] sm:$0xff]
  %v118 = vld [vmem:[%s3 + $0x58] sm:$0xff]
  %v119 = vld [vmem:[%s3 + $0x60] sm:$0xff]
  %v120 = vld [vmem:[%s3 + $0x68] sm:$0xff]
  %v121 = vld [vmem:[%s3 + $0x70] sm:$0xff]
  %v122 = vld [vmem:[%s3 + $0x78] sm:$0xff]
  %v123 = vld [vmem:[%s4] sm:$0x1]
  %v125 = vlaneseq
  %v126 = vshrl.u32 %v125, 7
  %v127 = vsub.s32 0, %v126
  %v128 = vrot.slane %v123, %v127
  %130 = vmatprep.subr.mxu0 0.0
  %131 = vmatpush1.msra.mxu0 %v122
  %132 = vmatprep.subr.mxu0 0.0
  %133 = vmatpush1.msra.mxu0 %v121
  %134 = vmatprep.subr.mxu0 0.0
  %135 = vmatpush1.msra.mxu0 %v120
  %136 = vmatprep.subr.mxu0 0.0
  %137 = vmatpush1.msra.mxu0 %v119
  %138 = vmatprep.subr.mxu0 0.0
  %139 = vmatpush1.msra.mxu0 %v118
  %140 = vmatprep.subr.mxu0 0.0
  %141 = vmatpush1.msra.mxu0 %v117
  %142 = vmatprep.subr.mxu0 0.0
  %143 = vmatpush1.msra.mxu0 %v116
  %144 = vmatprep.subr.mxu0 0.0
  %145 = vmatpush1.msra.mxu0 %v115
  %146 = vmatprep.subr.mxu0 0.0
  %147 = vmatpush1.msra.mxu0 %v114
  %148 = vmatprep.subr.mxu0 0.0
  %149 = vmatpush1.msra.mxu0 %v113
  %150 = vmatprep.subr.mxu0 0.0
  %151 = vmatpush1.msra.mxu0 %v112
  %152 = vmatprep.subr.mxu0 0.0
  %153 = vmatpush1.msra.mxu0 %v111
  %154 = vmatprep.subr.mxu0 0.0
  %155 = vmatpush1.msra.mxu0 %v110
  %156 = vmatprep.subr.mxu0 0.0
  %157 = vmatpush1.msra.mxu0 %v109
  %158 = vmatprep.subr.mxu0 0.0
  %159 = vmatpush1.msra.mxu0 %v108
  %160 = vmatprep.subr.mxu0 0.0
  %161 = vmatpush1.msra.mxu0 %v107
  %162 = vmatprep.subr.mxu0 0.0
  %163 = vmatpush2.msra.mxu0 0.0
  %164 = vmatprep.subr.mxu0 0.0
  %165 = vmatpush2.msra.mxu0 0.0
  %166 = vmatprep.subr.mxu0 0.0
  %167 = vmatpush2.msra.mxu0 0.0
  %168 = vmatprep.subr.mxu0 0.0
  %169 = vmatpush2.msra.mxu0 0.0
  %170 = vmatprep.subr.mxu0 0.0
  %171 = vmatpush2.msra.mxu0 0.0
  %172 = vmatprep.subr.mxu0 0.0
  %173 = vmatpush2.msra.mxu0 0.0
  %174 = vmatprep.subr.mxu0 0.0
  %175 = vmatpush2.msra.mxu0 0.0
  %176 = vmatprep.subr.mxu0 0.0
  %177 = vmatpush2.msra.mxu0 0.0
  %178 = vmatprep.subr.mxu0 0.0
  %179 = vmatpush2.msra.mxu0 0.0
  %180 = vmatprep.subr.mxu0 0.0
  %181 = vmatpush2.msra.mxu0 0.0
  %182 = vmatprep.subr.mxu0 0.0
  %183 = vmatpush2.msra.mxu0 0.0
  %184 = vmatprep.subr.mxu0 0.0
  %185 = vmatpush2.msra.mxu0 0.0
  %186 = vmatprep.subr.mxu0 0.0
  %187 = vmatpush2.msra.mxu0 0.0
  %188 = vmatprep.subr.mxu0 0.0
  %189 = vmatpush2.msra.mxu0 0.0
  %190 = vmatprep.subr.mxu0 0.0
  %191 = vmatpush2.msra.mxu0 0.0
  %192 = vmatprep.subr.mxu0 0.0
  %193 = vmatpush2.msra.mxu0 0.0
  %194 = vmatprep.mubr.f32.mxu0 0.0
  %195 = vmatmul.mubr.f32.gmra.mxu0 %v106
  %v196 = vpop.f32.mrf.mxu0
  %v197 = vadd.f32 %v128, %v196
  %v198 = vpop.f32.mrf.mxu0
  %199 = vdwg.mxu0
  %vm200 = vcmask 39936
  %201 = vst.msk [vmem:[%s5] sm:$0xff] %vm200, %v197
  // Predicated region
  $region22: #{prediction_network_forward.1} parent=0 // pred_check
    _
  $region23: #{prediction_network_forward.1} parent=0 // pred_check_branch
    %203 = sbr.rel (0) target = $region25
  $region24: #{prediction_network_forward.1} parent=0 // pred_region
    _
  $region25: #{prediction_network_forward.1} parent=0 // pred_fallthru
    _
  // Predicated region
  $region26: #{prediction_network_forward.1} parent=0 // pred_check
    _
  $region27: #{prediction_network_forward.1} parent=0 // pred_check_branch
    %205 = sbr.rel (0) target = $region29
  $region28: #{prediction_network_forward.1} parent=0 // pred_region
    _
  $region29: #{prediction_network_forward.1} parent=0 // pred_fallthru
    _

</llo_original>
